<compile_context>
chip_gen: v6e
topology: v6e:2x2x1
jax: 0.10.0
libtpu: 0.0.40
codegen_flags: <defaults>
</compile_context>

<pallas_src>
import functools

import jax
import jax.numpy as jnp
from jax.experimental import pallas as pl
from jax.experimental.pallas import tpu as pltpu


def _round_up(x, m):
    return ((x + m - 1) // m) * m


def _select_config():
    """Per-generation tile size and VMEM budget."""
    kind = ""
    try:
        kind = jax.devices()[0].device_kind.lower()
    except Exception:
        pass
    if ("v5" in kind) or ("v6" in kind):
        # 128 MiB VMEM: larger dst/src tiles amortize the ~0.35 us per-grid-step overhead.
        return 512, 100 * 1024 * 1024
    # v7x (64 MiB VMEM per TensorCore) and unknown chips: conservative budget.
    return 256, 56 * 1024 * 1024


def _block_diag_rows(a):
    """(H, F) -> (H, H*F): row h holds a[h] in columns [h*F, (h+1)*F), zeros elsewhere."""
    h, f = a.shape
    eye = jnp.eye(h, dtype=a.dtype)
    return (eye[:, :, None] * a[:, None, :]).reshape(h, h * f)


# ----------------------------- kernel 1: projection -----------------------------
def _proj_kernel(x_ref, w_ref, al_ref, ar_ref, feat_ref, elt_ref, er_ref):
    x = x_ref[...].astype(jnp.float32)                                   # bf16 or f32 in HBM
    feat = jnp.dot(x, w_ref[...], preferred_element_type=jnp.float32)    # (T, H*F) f32

    # Per-head attention logits with ONE contraction each (attention vectors packed
    # block-diagonally over the H*F axis) instead of 2*H tiny M=1 MXU pushes.
    elt_ref[...] = jax.lax.dot_general(                                   # (H, T) lane-dense
        al_ref[...], feat, (((1,), (1,)), ((), ())),
        preferred_element_type=jnp.float32)
    er_ref[...] = jax.lax.dot_general(                                    # (T, H)
        feat, ar_ref[...], (((1,), (1,)), ((), ())),
        preferred_element_type=jnp.float32)

    feat_ref[...] = feat.astype(feat_ref.dtype)                           # bf16 writeback


# --------------------- kernel 2: online-softmax edge attention ---------------------
def _attn_kernel(adj_ref, fsrc_ref, elt_ref, er_ref, b_ref, out_ref,
                 m_sc, l_sc, acc_sc, *, num_heads, out_feats, neg_slope, apply_elu):
    j = pl.program_id(1)                                    # src-tile index (reduction axis)

    @pl.when(j == 0)
    def _():
        m_sc[...] = jnp.full(m_sc.shape, -1e30, jnp.float32)
        l_sc[...] = jnp.zeros(l_sc.shape, jnp.float32)
        acc_sc[...] = jnp.zeros(acc_sc.shape, jnp.float32)

    # Head-invariant mask work, hoisted: adjacency values are 0/1, so
    # (a - 1) * 1e30 gives 0 for edges and -1e30 for non-edges (pure arithmetic, no select).
    neg_bias = (adj_ref[...].astype(jnp.float32) - 1.0) * 1e30   # (Td, Ts)

    feat_src = fsrc_ref[...]                                     # (Ts, H*F) bf16
    m_prev_all = m_sc[...]                                       # (Td, H)
    l_prev_all = l_sc[...]                                       # (Td, H)

    td = neg_bias.shape[0]
    f = out_feats

    m_new_list, l_new_list, corr_list, pv_list = [], [], [], []
    for h in range(num_heads):                                   # static unroll over heads
        el = elt_ref[h:h + 1, :]                                 # (1, Ts)  source logits
        er = er_ref[:, h:h + 1]                                  # (Td, 1)  destination logits
        s = er + el                                              # score[v, u] = er[v] + el[u]
        s = jnp.maximum(s, neg_slope * s)                        # LeakyReLU: mul + max
        s = s + neg_bias                                         # additive mask

        m_prev = m_prev_all[:, h:h + 1]
        m_new = jnp.maximum(m_prev, jnp.max(s, axis=1, keepdims=True))
        corr = jnp.exp(m_prev - m_new)                           # rescale older partials (EUP)
        p = jnp.exp(s - m_new)                                   # masked entries underflow to 0

        m_new_list.append(m_new)
        corr_list.append(corr)
        l_new_list.append(corr * l_prev_all[:, h:h + 1] + jnp.sum(p, axis=1, keepdims=True))
        # Per-head aggregation on the MXU in bf16 (f32 accumulate) -- no block-diagonal feat.
        pv_list.append(jnp.dot(p.astype(jnp.bfloat16), feat_src[:, h * f:(h + 1) * f],
                               preferred_element_type=jnp.float32))

    def cat(xs):
        return xs[0] if len(xs) == 1 else jnp.concatenate(xs, axis=1)

    m_sc[...] = cat(m_new_list)
    l_sc[...] = cat(l_new_list)
    corr_b = cat([jnp.broadcast_to(c, (td, f)) for c in corr_list])       # (Td, H*F)
    acc_sc[...] = corr_b * acc_sc[...] + cat(pv_list)

    @pl.when(j == pl.num_programs(1) - 1)
    def _():
        l_all = l_sc[...]
        l_safe = jnp.where(l_all > 0, l_all, 1.0)                # guard (zero in-degree)
        inv = pl.reciprocal(l_safe, approx=True)                 # EUP slot
        inv = inv * (2.0 - l_safe * inv)                         # one Newton step -> ~exact
        inv_b = cat([jnp.broadcast_to(inv[:, h:h + 1], (td, f)) for h in range(num_heads)])
        out = acc_sc[...] * inv_b + b_ref[...]
        if apply_elu:
            out = jnp.where(out > 0, out, jnp.exp(out) - 1.0)
        out_ref[...] = out.astype(out_ref.dtype)                 # single full-width store


# --------------------------------- wrappers ---------------------------------
def gat_layer(x, w, attn_l, attn_r, bias, adj_i8, *, num_heads, out_feats,
              neg_slope=0.2, apply_elu=False, out_dtype=jnp.float32,
              tile=256, vmem_limit=56 * 1024 * 1024):
    n, in_dim = x.shape                                   # n already padded to a tile multiple
    hf = num_heads * out_feats

    al_full = _block_diag_rows(attn_l)                    # (H, H*F)
    ar_full = _block_diag_rows(attn_r)                    # (H, H*F)

    # ---- kernel 1: row-tiled projection ----
    feat, elt, er = pl.pallas_call(
        _proj_kernel,
        out_shape=(jax.ShapeDtypeStruct((n, hf), jnp.bfloat16),        # feat (bf16)
                   jax.ShapeDtypeStruct((num_heads, n), jnp.float32),  # el  (H, N) lane-dense
                   jax.ShapeDtypeStruct((n, num_heads), jnp.float32)), # er  (N, H)
        grid=(n // tile,),
        in_specs=[pl.BlockSpec((tile, in_dim), lambda i: (i, 0)),
                  pl.BlockSpec((in_dim, hf), lambda i: (0, 0)),
                  pl.BlockSpec((num_heads, hf), lambda i: (0, 0)),
                  pl.BlockSpec((num_heads, hf), lambda i: (0, 0))],
        out_specs=(pl.BlockSpec((tile, hf), lambda i: (i, 0)),
                   pl.BlockSpec((num_heads, tile), lambda i: (0, i)),
                   pl.BlockSpec((tile, num_heads), lambda i: (i, 0))),
        compiler_params=pltpu.CompilerParams(
            dimension_semantics=("parallel",),
            vmem_limit_bytes=vmem_limit),
    )(x, w, al_full, ar_full)

    # ---- kernel 2: online-softmax attention + aggregation over (dst, src) tiles ----
    grid = (n // tile, n // tile)
    return pl.pallas_call(
        functools.partial(_attn_kernel, num_heads=num_heads, out_feats=out_feats,
                          neg_slope=neg_slope, apply_elu=apply_elu),
        out_shape=jax.ShapeDtypeStruct((n, hf), out_dtype),
        grid=grid,
        in_specs=[
            pl.BlockSpec((tile, tile), lambda i, j: (i, j)),          # adjacency tile (int8)
            pl.BlockSpec((tile, hf), lambda i, j: (j, 0)),            # src feat tile (bf16)
            pl.BlockSpec((num_heads, tile), lambda i, j: (0, j)),     # el (source logits)
            pl.BlockSpec((tile, num_heads), lambda i, j: (i, 0)),     # er (destination logits)
            pl.BlockSpec((1, hf), lambda i, j: (0, 0)),               # bias (resident)
        ],
        out_specs=pl.BlockSpec((tile, hf), lambda i, j: (i, 0)),      # resident across src axis
        scratch_shapes=[
            pltpu.VMEM((tile, num_heads), jnp.float32),   # running max  m
            pltpu.VMEM((tile, num_heads), jnp.float32),   # running denominator l
            pltpu.VMEM((tile, hf), jnp.float32),          # running weighted sum
        ],
        compiler_params=pltpu.CompilerParams(
            dimension_semantics=("parallel", "arbitrary"),
            vmem_limit_bytes=vmem_limit),
    )(adj_i8, feat, elt, er, bias)


def gat_forward(params, features, adj_t, *, num_heads, h_feats, num_classes):
    n = features.shape[0]
    tile_cfg, vmem_limit = _select_config()
    if n <= tile_cfg:
        tile, n_pad = n, n
    else:
        tile = tile_cfg
        n_pad = _round_up(n, tile)
    if n_pad != n:
        # Zero-pad the graph so every block is full (no undefined Pallas block padding).
        features = jnp.pad(features, ((0, n_pad - n), (0, 0)))
        adj_t = jnp.pad(adj_t, ((0, n_pad - n), (0, n_pad - n)))

    # int8 adjacency stream: values are 0/1; 4x less HBM traffic than f32.
    adj_i8 = adj_t.astype(jnp.int8)
    # TODO(synk): keep the int8 adjacency resident in VMEM across both layers (or fuse the
    # two attention passes per dst tile) instead of re-streaming it from HBM for layer 2.

    # x = F.elu(conv1(g, features).flatten(1))   -- layer-1 activations emitted in bf16
    x = gat_layer(features, params["w1"], params["al1"], params["ar1"], params["b1"],
                  adj_i8, num_heads=num_heads, out_feats=h_feats, apply_elu=True,
                  out_dtype=jnp.bfloat16, tile=tile, vmem_limit=vmem_limit)
    # x = conv2(g, x).mean(1)   (conv2 has a single head)
    x = gat_layer(x, params["w2"], params["al2"], params["ar2"], params["b2"],
                  adj_i8, num_heads=1, out_feats=num_classes, apply_elu=False,
                  out_dtype=jnp.float32, tile=tile, vmem_limit=vmem_limit)

    logits = x[:n]
    return logits.reshape(n, 1, num_classes).mean(axis=1)


# ---------------- pure-JAX reference (same math, f32, no Pallas) -----------------
def gat_layer_ref(x, w, attn_l, attn_r, bias, adj_t, num_heads, out_feats,
                  neg_slope=0.2, apply_elu=False):
    n = x.shape[0]
    feat = (x @ w).reshape(n, num_heads, out_feats)
    el = jnp.einsum('nhf,hf->nh', feat, attn_l)
    er = jnp.einsum('nhf,hf->nh', feat, attn_r)
    s = er[:, None, :] + el[None, :, :]                  # (v, u, h)
    s = jnp.where(s > 0, s, neg_slope * s)
    mask = (adj_t > 0.5)[:, :, None]
    s = jnp.where(mask, s, -1e30)
    s_max = s.max(axis=1, keepdims=True)
    p = jnp.where(mask, jnp.exp(s - s_max), 0.0)
    denom = p.sum(axis=1, keepdims=True)
    alpha = p / jnp.where(denom > 0, denom, 1.0)
    out = jnp.einsum('vuh,uhf->vhf', alpha, feat) + bias.reshape(1, num_heads, out_feats)
    out = out.reshape(n, num_heads * out_feats)
    if apply_elu:
        out = jnp.where(out > 0, out, jnp.exp(out) - 1.0)
    return out


if __name__ == "__main__":
    N, IN_FEATS, H_FEATS, NUM_HEADS, NUM_CLASSES = 16, 8, 8, 2, 4

    key = jax.random.PRNGKey(0)
    ks = jax.random.split(key, 8)

    features = jax.random.normal(ks[0], (N, IN_FEATS), dtype=jnp.float32)

    # Deterministic random directed graph with self loops; adj[u, v] = 1 for edge u -> v.
    adj = (jax.random.uniform(ks[1], (N, N)) < 0.3).astype(jnp.float32)
    adj = jnp.maximum(adj, jnp.eye(N, dtype=jnp.float32))
    adj_t = adj.T                                        # (dst, src) orientation for the kernel

    params = {
        "w1": 0.3 * jax.random.normal(ks[2], (IN_FEATS, NUM_HEADS * H_FEATS), dtype=jnp.float32),
        "al1": 0.3 * jax.random.normal(ks[3], (NUM_HEADS, H_FEATS), dtype=jnp.float32),
        "ar1": 0.3 * jax.random.normal(ks[4], (NUM_HEADS, H_FEATS), dtype=jnp.float32),
        "b1": jnp.zeros((1, NUM_HEADS * H_FEATS), dtype=jnp.float32),
        "w2": 0.3 * jax.random.normal(ks[5], (NUM_HEADS * H_FEATS, NUM_CLASSES), dtype=jnp.float32),
        "al2": 0.3 * jax.random.normal(ks[6], (1, NUM_CLASSES), dtype=jnp.float32),
        "ar2": 0.3 * jax.random.normal(ks[7], (1, NUM_CLASSES), dtype=jnp.float32),
        "b2": jnp.zeros((1, NUM_CLASSES), dtype=jnp.float32),
    }

    logits = gat_forward(params, features, adj_t,
                         num_heads=NUM_HEADS, h_feats=H_FEATS, num_classes=NUM_CLASSES)
    logits = jax.block_until_ready(logits)

    # Sanity check against the pure-JAX f32 reference of the same forward pass.
    # Tolerance accounts for bf16 MXU operands (feat/alpha) and bf16 inter-layer activations;
    # a functional bug would show O(1) differences.
    x1_ref = gat_layer_ref(features, params["w1"], params["al1"], params["ar1"], params["b1"],
                           adj_t, NUM_HEADS, H_FEATS, apply_elu=True)
    ref = gat_layer_ref(x1_ref, params["w2"], params["al2"], params["ar2"], params["b2"],
                        adj_t, 1, NUM_CLASSES).reshape(N, 1, NUM_CLASSES).mean(axis=1)
    assert logits.shape == (N, NUM_CLASSES)
    assert bool(jnp.all(jnp.isfinite(logits)))
    assert bool(jnp.allclose(logits, ref, atol=5e-2, rtol=5e-2))

    print("KERNEL_OK")
</pallas_src>

<mosaic_0001>
module attributes {stable_mosaic.version = 11 : i64} {
  func.func @_proj_kernel(%arg0: i32, %arg1: memref<16x8xf32, #tpu.memory_space<vmem>>, %arg2: memref<8x16xf32, #tpu.memory_space<vmem>>, %arg3: memref<2x16xf32, #tpu.memory_space<vmem>>, %arg4: memref<2x16xf32, #tpu.memory_space<vmem>>, %arg5: memref<16x16xbf16, #tpu.memory_space<vmem>>, %arg6: memref<2x16xf32, #tpu.memory_space<vmem>>, %arg7: memref<16x2xf32, #tpu.memory_space<vmem>>) attributes {dimension_semantics = [#tpu.dimension_semantics<parallel>], iteration_bounds = array<i64: 1>, scalar_prefetch = 0 : i64, scratch_operands = 0 : i64, tpu.core_type = #tpu.core_type<tc>, window_params = [{transform_indices = @transform_0, window_bounds = array<i64: 16, 8>}, {pipeline_mode = #tpu.pipeline_mode<synchronous>, transform_indices = @transform_1, window_bounds = array<i64: 8, 16>}, {pipeline_mode = #tpu.pipeline_mode<synchronous>, transform_indices = @transform_2, window_bounds = array<i64: 2, 16>}, {pipeline_mode = #tpu.pipeline_mode<synchronous>, transform_indices = @transform_3, window_bounds = array<i64: 2, 16>}, {transform_indices = @transform_4, window_bounds = array<i64: 16, 16>}, {transform_indices = @transform_5, window_bounds = array<i64: 2, 16>}, {transform_indices = @transform_6, window_bounds = array<i64: 16, 2>}]} {
    %c0 = arith.constant 0 : index
    %c0_0 = arith.constant 0 : index
    %0 = vector.load %arg1[%c0, %c0_0] : memref<16x8xf32, #tpu.memory_space<vmem>>, vector<16x8xf32>
    %c0_1 = arith.constant 0 : index
    %c0_2 = arith.constant 0 : index
    %1 = vector.load %arg2[%c0_1, %c0_2] : memref<8x16xf32, #tpu.memory_space<vmem>>, vector<8x16xf32>
    %cst = arith.constant dense<0.000000e+00> : vector<16x16xf32>
    %2 = tpu.matmul %0, %1, %cst {dimension_numbers = #tpu.dot_dimension_numbers<[1], [0], [0], [1], [0, 0, 1, 1], [], []>} : vector<16x8xf32>, vector<8x16xf32>, vector<16x16xf32> -> vector<16x16xf32>
    %c0_3 = arith.constant 0 : index
    %c0_4 = arith.constant 0 : index
    %3 = vector.load %arg3[%c0_3, %c0_4] : memref<2x16xf32, #tpu.memory_space<vmem>>, vector<2x16xf32>
    %cst_5 = arith.constant dense<0.000000e+00> : vector<2x16xf32>
    %4 = tpu.matmul %3, %2, %cst_5 {dimension_numbers = #tpu.dot_dimension_numbers<[1], [1], [0], [0], [0, 0, 1, 0], [], []>} : vector<2x16xf32>, vector<16x16xf32>, vector<2x16xf32> -> vector<2x16xf32>
    %c0_6 = arith.constant 0 : index
    %c0_7 = arith.constant 0 : index
    %5 = vector.load %arg6[%c0_6, %c0_7] : memref<2x16xf32, #tpu.memory_space<vmem>>, vector<2x16xf32>
    tpu.vector_store %arg6[%c0_6, %c0_7], %4 {strides = array<i32>} : memref<2x16xf32, #tpu.memory_space<vmem>>, vector<2x16xf32>,
    %c0_8 = arith.constant 0 : index
    %c0_9 = arith.constant 0 : index
    %6 = vector.load %arg4[%c0_8, %c0_9] : memref<2x16xf32, #tpu.memory_space<vmem>>, vector<2x16xf32>
    %cst_10 = arith.constant dense<0.000000e+00> : vector<16x2xf32>
    %7 = tpu.matmul %2, %6, %cst_10 {dimension_numbers = #tpu.dot_dimension_numbers<[1], [1], [0], [0], [0, 0, 1, 0], [], []>} : vector<16x16xf32>, vector<2x16xf32>, vector<16x2xf32> -> vector<16x2xf32>
    %c0_11 = arith.constant 0 : index
    %c0_12 = arith.constant 0 : index
    %8 = vector.load %arg7[%c0_11, %c0_12] : memref<16x2xf32, #tpu.memory_space<vmem>>, vector<16x2xf32>
    tpu.vector_store %arg7[%c0_11, %c0_12], %7 {strides = array<i32>} : memref<16x2xf32, #tpu.memory_space<vmem>>, vector<16x2xf32>,
    %9 = arith.truncf %2 : vector<16x16xf32> to vector<16x16xbf16>
    %c0_13 = arith.constant 0 : index
    %c0_14 = arith.constant 0 : index
    %10 = vector.load %arg5[%c0_13, %c0_14] : memref<16x16xbf16, #tpu.memory_space<vmem>>, vector<16x16xbf16>
    tpu.vector_store %arg5[%c0_13, %c0_14], %9 {strides = array<i32>} : memref<16x16xbf16, #tpu.memory_space<vmem>>, vector<16x16xbf16>,
    return
  }
  func.func @transform_0(%arg0: i32) -> (i32, i32) {
    %c0_i32 = arith.constant 0 : i32
    %c0_i32_0 = arith.constant 0 : i32
    return %arg0, %c0_i32 : i32, i32
  }
  func.func @transform_1(%arg0: i32) -> (i32, i32) {
    %c0_i32 = arith.constant 0 : i32
    %c0_i32_0 = arith.constant 0 : i32
    %c0_i32_1 = arith.constant 0 : i32
    return %c0_i32, %c0_i32_0 : i32, i32
  }
  func.func @transform_2(%arg0: i32) -> (i32, i32) {
    %c0_i32 = arith.constant 0 : i32
    %c0_i32_0 = arith.constant 0 : i32
    %c0_i32_1 = arith.constant 0 : i32
    return %c0_i32, %c0_i32_0 : i32, i32
  }
  func.func @transform_3(%arg0: i32) -> (i32, i32) {
    %c0_i32 = arith.constant 0 : i32
    %c0_i32_0 = arith.constant 0 : i32
    %c0_i32_1 = arith.constant 0 : i32
    return %c0_i32, %c0_i32_0 : i32, i32
  }
  func.func @transform_4(%arg0: i32) -> (i32, i32) {
    %c0_i32 = arith.constant 0 : i32
    %c0_i32_0 = arith.constant 0 : i32
    return %arg0, %c0_i32 : i32, i32
  }
  func.func @transform_5(%arg0: i32) -> (i32, i32) {
    %c0_i32 = arith.constant 0 : i32
    %c0_i32_0 = arith.constant 0 : i32
    return %c0_i32, %arg0 : i32, i32
  }
  func.func @transform_6(%arg0: i32) -> (i32, i32) {
    %c0_i32 = arith.constant 0 : i32
    %c0_i32_0 = arith.constant 0 : i32
    return %arg0, %c0_i32 : i32, i32
  }
}

</mosaic_0001>

<llo_original>
// kernel: tpu_custom_call.1
$region0: #{tpu_custom_call.1}
  #allocation0 [shape = 'u32[]', space=smem, size = 0x4, offset = 0x4, fixed_abs, tag = 'smem constant byte address 0x4 - core index']
  #allocation1 [shape = 'u32[144,128]{1,0:T(1,128)}', space=vmem, size = 0x12000, scoped, tag = 'internal scratch']
  %s0 = inlined_call_operand.vmem [shape: f32[16,8], index: 0, kind: input, shape index: {}]
  %s1 = inlined_call_operand.vmem [shape: f32[8,16], index: 1, kind: input, shape index: {}]
  %s2 = inlined_call_operand.vmem [shape: f32[2,16], index: 2, kind: input, shape index: {}]
  %s3 = inlined_call_operand.vmem [shape: f32[2,16], index: 3, kind: input, shape index: {}]
  %s4 = inlined_call_operand.hbm [shape: bf16[16,16], index: 4, kind: output, shape index: {0}]
  %s5 = inlined_call_operand.hbm [shape: f32[2,16], index: 5, kind: output, shape index: {1}]
  %s6 = inlined_call_operand.vmem [shape: f32[16,2], index: 6, kind: output, shape index: {2}]
  %7 = xla_tuple %s4, %s5, %s6
  %s8 = sld [smem:[#allocation0]]
  $region42: #{tpu_custom_call.1} parent=0
    _
  %s10 = ssub.s32 1, %s8
  %s11 = scalar_select 0, %s10, %s8
  $region1: #{tpu_custom_call.1} parent=0
    #allocation2 [shape = 'u8[4096]{0}', space=vmem, size = 0x1000, scoped, tag = 'output window, operand 0, single buffered']
    #allocation3 [shape = 's32[1]{0}', space=sflag, size = 0x4, scoped, tag = 'scoped memory for tpu_custom_call.1']
    #allocation4 [shape = 'u8[1024]{0}', space=vmem, size = 0x400, scoped, tag = 'output window, operand 1, single buffered']
    #allocation5 [shape = 's32[1]{0}', space=sflag, size = 0x4, scoped, tag = 'scoped memory for tpu_custom_call.1']
    %12 = vsyncpa [#allocation3], 0
    %13 = vsyncpa [#allocation5], 0
    // Predicated region
    $region2: #{tpu_custom_call.1} parent=1 // pred_check
      _
    $region3: #{tpu_custom_call.1} parent=1 // pred_check_branch
      %15 = sbr.rel (0) target = $region5
    $region4: #{tpu_custom_call.1} parent=1 // pred_region
      _
    $region5: #{tpu_custom_call.1} parent=1 // pred_fallthru
      _
    // Predicated region
    $region6: #{tpu_custom_call.1} parent=1 // pred_check
      _
    $region7: #{tpu_custom_call.1} parent=1 // pred_check_branch
      %17 = sbr.rel (0) target = $region9
    $region8: #{tpu_custom_call.1} parent=1 // pred_region
      _
    $region9: #{tpu_custom_call.1} parent=1 // pred_fallthru
      _
    // Predicated region
    $region10: #{tpu_custom_call.1} parent=1 // pred_check
      _
    $region11: #{tpu_custom_call.1} parent=1 // pred_check_branch
      %19 = sbr.rel (0) target = $region13
    $region12: #{tpu_custom_call.1} parent=1 // pred_region
      _
    $region13: #{tpu_custom_call.1} parent=1 // pred_fallthru
      _
    // Predicated region
    $region14: #{tpu_custom_call.1} parent=1 // pred_check
      _
    $region15: #{tpu_custom_call.1} parent=1 // pred_check_branch
      %21 = sbr.rel (0) target = $region17
    $region16: #{tpu_custom_call.1} parent=1 // pred_region
      _
    $region17: #{tpu_custom_call.1} parent=1 // pred_fallthru
      _
    %v22 = vld [vmem:[%s0] sm:$0xff]
    %v23 = vld [vmem:[%s0 + $0x8] sm:$0xff]
    %v24 = vld [vmem:[%s1] sm:$0xff]
    %vm25 = vcmask 64512
    %v27 = vsel %vm25, %v22, 0
    %v30 = vsel %vm25, %v23, 0
    %32 = vmatprep.subr.mxu0 0.0
    %33 = vmatpush1.msra.mxu0 0.0
    %34 = vmatprep.subr.mxu0 0.0
    %35 = vmatpush1.msra.mxu0 0.0
    %36 = vmatprep.subr.mxu0 0.0
    %37 = vmatpush1.msra.mxu0 0.0
    %38 = vmatprep.subr.mxu0 0.0
    %39 = vmatpush1.msra.mxu0 0.0
    %40 = vmatprep.subr.mxu0 0.0
    %41 = vmatpush1.msra.mxu0 0.0
    %42 = vmatprep.subr.mxu0 0.0
    %43 = vmatpush1.msra.mxu0 0.0
    %44 = vmatprep.subr.mxu0 0.0
    %45 = vmatpush1.msra.mxu0 0.0
    %46 = vmatprep.subr.mxu0 0.0
    %47 = vmatpush1.msra.mxu0 0.0
    %48 = vmatprep.subr.mxu0 0.0
    %49 = vmatpush1.msra.mxu0 0.0
    %50 = vmatprep.subr.mxu0 0.0
    %51 = vmatpush1.msra.mxu0 0.0
    %52 = vmatprep.subr.mxu0 0.0
    %53 = vmatpush1.msra.mxu0 0.0
    %54 = vmatprep.subr.mxu0 0.0
    %55 = vmatpush1.msra.mxu0 0.0
    %56 = vmatprep.subr.mxu0 0.0
    %57 = vmatpush1.msra.mxu0 0.0
    %58 = vmatprep.subr.mxu0 0.0
    %59 = vmatpush1.msra.mxu0 0.0
    %60 = vmatprep.subr.mxu0 0.0
    %61 = vmatpush1.msra.mxu0 0.0
    %62 = vmatprep.subr.mxu0 0.0
    %63 = vmatpush1.msra.mxu0 %v24
    %64 = vmatprep.subr.mxu0 0.0
    %65 = vmatpush2.msra.mxu0 0.0
    %66 = vmatprep.subr.mxu0 0.0
    %67 = vmatpush2.msra.mxu0 0.0
    %68 = vmatprep.subr.mxu0 0.0
    %69 = vmatpush2.msra.mxu0 0.0
    %70 = vmatprep.subr.mxu0 0.0
    %71 = vmatpush2.msra.mxu0 0.0
    %72 = vmatprep.subr.mxu0 0.0
    %73 = vmatpush2.msra.mxu0 0.0
    %74 = vmatprep.subr.mxu0 0.0
    %75 = vmatpush2.msra.mxu0 0.0
    %76 = vmatprep.subr.mxu0 0.0
    %77 = vmatpush2.msra.mxu0 0.0
    %78 = vmatprep.subr.mxu0 0.0
    %79 = vmatpush2.msra.mxu0 0.0
    %80 = vmatprep.subr.mxu0 0.0
    %81 = vmatpush2.msra.mxu0 0.0
    %82 = vmatprep.subr.mxu0 0.0
    %83 = vmatpush2.msra.mxu0 0.0
    %84 = vmatprep.subr.mxu0 0.0
    %85 = vmatpush2.msra.mxu0 0.0
    %86 = vmatprep.subr.mxu0 0.0
    %87 = vmatpush2.msra.mxu0 0.0
    %88 = vmatprep.subr.mxu0 0.0
    %89 = vmatpush2.msra.mxu0 0.0
    %90 = vmatprep.subr.mxu0 0.0
    %91 = vmatpush2.msra.mxu0 0.0
    %92 = vmatprep.subr.mxu0 0.0
    %93 = vmatpush2.msra.mxu0 0.0
    %94 = vmatprep.subr.mxu0 0.0
    %95 = vmatpush2.msra.mxu0 0.0
    %96 = vmatprep.mubr.f32.mxu0 0.0
    %97 = vmatmul.mubr.f32.gmra.mxu0 %v27
    %v98 = vpop.f32.mrf.mxu0
    %v99 = vadd.f32 0.0, %v98
    %v100 = vpop.f32.mrf.mxu0
    %101 = vmatprep.mubr.f32.mxu0 0.0
    %102 = vmatmul.mubr.f32.gmra.mxu0 %v30
    %v103 = vpop.f32.mrf.mxu0
    %v104 = vadd.f32 0.0, %v103
    %v105 = vpop.f32.mrf.mxu0
    %106 = vdwg.mxu0
    %v107 = vld [vmem:[%s2] sm:$0x3]
    %vm108 = vcmask 130048
    %v110 = vsel %vm108, %v107, 0
    %v113 = vsel %vm108, %v99, 0
    %v116 = vsel %vm108, %v104, 0
    %118 = vmatprep.subr.mxu0 0.0
    %119 = vmatpush1.xpose.msra.mxu0 0.0
    %120 = vmatprep.subr.mxu0 0.0
    %121 = vmatpush1.xpose.msra.mxu0 0.0
    %122 = vmatprep.subr.mxu0 0.0
    %123 = vmatpush1.xpose.msra.mxu0 0.0
    %124 = vmatprep.subr.mxu0 0.0
    %125 = vmatpush1.xpose.msra.mxu0 0.0
    %126 = vmatprep.subr.mxu0 0.0
    %127 = vmatpush1.xpose.msra.mxu0 0.0
    %128 = vmatprep.subr.mxu0 0.0
    %129 = vmatpush1.xpose.msra.mxu0 0.0
    %130 = vmatprep.subr.mxu0 0.0
    %131 = vmatpush1.xpose.msra.mxu0 0.0
    %132 = vmatprep.subr.mxu0 0.0
    %133 = vmatpush1.xpose.msra.mxu0 0.0
    %134 = vmatprep.subr.mxu0 0.0
    %135 = vmatpush1.xpose.msra.mxu0 0.0
    %136 = vmatprep.subr.mxu0 0.0
    %137 = vmatpush1.xpose.msra.mxu0 0.0
    %138 = vmatprep.subr.mxu0 0.0
    %139 = vmatpush1.xpose.msra.mxu0 0.0
    %140 = vmatprep.subr.mxu0 0.0
    %141 = vmatpush1.xpose.msra.mxu0 0.0
    %142 = vmatprep.subr.mxu0 0.0
    %143 = vmatpush1.xpose.msra.mxu0 0.0
    %144 = vmatprep.subr.mxu0 0.0
    %145 = vmatpush1.xpose.msra.mxu0 0.0
    %146 = vmatprep.subr.mxu0 0.0
    %147 = vmatpush1.xpose.msra.mxu0 %v116
    %148 = vmatprep.subr.mxu0 0.0
    %149 = vmatpush1.xpose.msra.mxu0 %v113
    %150 = vmatprep.subr.mxu0 0.0
    %151 = vmatpush2.xpose.msra.mxu0 0.0
    %152 = vmatprep.subr.mxu0 0.0
    %153 = vmatpush2.xpose.msra.mxu0 0.0
    %154 = vmatprep.subr.mxu0 0.0
    %155 = vmatpush2.xpose.msra.mxu0 0.0
    %156 = vmatprep.subr.mxu0 0.0
    %157 = vmatpush2.xpose.msra.mxu0 0.0
    %158 = vmatprep.subr.mxu0 0.0
    %159 = vmatpush2.xpose.msra.mxu0 0.0
    %160 = vmatprep.subr.mxu0 0.0
    %161 = vmatpush2.xpose.msra.mxu0 0.0
    %162 = vmatprep.subr.mxu0 0.0
    %163 = vmatpush2.xpose.msra.mxu0 0.0
    %164 = vmatprep.subr.mxu0 0.0
    %165 = vmatpush2.xpose.msra.mxu0 0.0
    %166 = vmatprep.subr.mxu0 0.0
    %167 = vmatpush2.xpose.msra.mxu0 0.0
    %168 = vmatprep.subr.mxu0 0.0
    %169 = vmatpush2.xpose.msra.mxu0 0.0
    %170 = vmatprep.subr.mxu0 0.0
    %171 = vmatpush2.xpose.msra.mxu0 0.0
    %172 = vmatprep.subr.mxu0 0.0
    %173 = vmatpush2.xpose.msra.mxu0 0.0
    %174 = vmatprep.subr.mxu0 0.0
    %175 = vmatpush2.xpose.msra.mxu0 0.0
    %176 = vmatprep.subr.mxu0 0.0
    %177 = vmatpush2.xpose.msra.mxu0 0.0
    %178 = vmatprep.subr.mxu0 0.0
    %179 = vmatpush2.xpose.msra.mxu0 0.0
    %180 = vmatprep.subr.mxu0 0.0
    %181 = vmatpush2.xpose.msra.mxu0 0.0
    %182 = vmatprep.mubr.f32.mxu0 0.0
    %183 = vmatmul.mubr.f32.gmra.mxu0 %v110
    %v184 = vpop.f32.mrf.mxu0
    %v185 = vadd.f32 0.0, %v184
    %v186 = vpop.f32.mrf.mxu0
    %187 = vdwg.mxu0
    %vm188 = vcmask 123904
    %189 = vst.msk [vmem:[#allocation4] sm:$0x3] %vm188, %v185
    %v190 = vld [vmem:[%s3] sm:$0x3]
    %v192 = vsel %vm108, %v190, 0
    %194 = vmatprep.subr.mxu0 0.0
    %195 = vmatpush1.xpose.msra.mxu0 0.0
    %196 = vmatprep.subr.mxu0 0.0
    %197 = vmatpush1.xpose.msra.mxu0 0.0
    %198 = vmatprep.subr.mxu0 0.0
    %199 = vmatpush1.xpose.msra.mxu0 0.0
    %200 = vmatprep.subr.mxu0 0.0
    %201 = vmatpush1.xpose.msra.mxu0 0.0
    %202 = vmatprep.subr.mxu0 0.0
    %203 = vmatpush1.xpose.msra.mxu0 0.0
    %204 = vmatprep.subr.mxu0 0.0
    %205 = vmatpush1.xpose.msra.mxu0 0.0
    %206 = vmatprep.subr.mxu0 0.0
    %207 = vmatpush1.xpose.msra.mxu0 0.0
    %208 = vmatprep.subr.mxu0 0.0
    %209 = vmatpush1.xpose.msra.mxu0 0.0
    %210 = vmatprep.subr.mxu0 0.0
    %211 = vmatpush1.xpose.msra.mxu0 0.0
    %212 = vmatprep.subr.mxu0 0.0
    %213 = vmatpush1.xpose.msra.mxu0 0.0
    %214 = vmatprep.subr.mxu0 0.0
    %215 = vmatpush1.xpose.msra.mxu0 0.0
    %216 = vmatprep.subr.mxu0 0.0
    %217 = vmatpush1.xpose.msra.mxu0 0.0
    %218 = vmatprep.subr.mxu0 0.0
    %219 = vmatpush1.xpose.msra.mxu0 0.0
    %220 = vmatprep.subr.mxu0 0.0
    %221 = vmatpush1.xpose.msra.mxu0 0.0
    %222 = vmatprep.subr.mxu0 0.0
    %223 = vmatpush1.xpose.msra.mxu0 0.0
    %224 = vmatprep.subr.mxu0 0.0
    %225 = vmatpush1.xpose.msra.mxu0 %v192
    %226 = vmatprep.subr.mxu0 0.0
    %227 = vmatpush2.xpose.msra.mxu0 0.0
    %228 = vmatprep.subr.mxu0 0.0
    %229 = vmatpush2.xpose.msra.mxu0 0.0
    %230 = vmatprep.subr.mxu0 0.0
    %231 = vmatpush2.xpose.msra.mxu0 0.0
    %232 = vmatprep.subr.mxu0 0.0
    %233 = vmatpush2.xpose.msra.mxu0 0.0
    %234 = vmatprep.subr.mxu0 0.0
    %235 = vmatpush2.xpose.msra.mxu0 0.0
    %236 = vmatprep.subr.mxu0 0.0
    %237 = vmatpush2.xpose.msra.mxu0 0.0
    %238 = vmatprep.subr.mxu0 0.0
    %239 = vmatpush2.xpose.msra.mxu0 0.0
    %240 = vmatprep.subr.mxu0 0.0
    %241 = vmatpush2.xpose.msra.mxu0 0.0
    %242 = vmatprep.subr.mxu0 0.0
    %243 = vmatpush2.xpose.msra.mxu0 0.0
    %244 = vmatprep.subr.mxu0 0.0
    %245 = vmatpush2.xpose.msra.mxu0 0.0
    %246 = vmatprep.subr.mxu0 0.0
    %247 = vmatpush2.xpose.msra.mxu0 0.0
    %248 = vmatprep.subr.mxu0 0.0
    %249 = vmatpush2.xpose.msra.mxu0 0.0
    %250 = vmatprep.subr.mxu0 0.0
    %251 = vmatpush2.xpose.msra.mxu0 0.0
    %252 = vmatprep.subr.mxu0 0.0
    %253 = vmatpush2.xpose.msra.mxu0 0.0
    %254 = vmatprep.subr.mxu0 0.0
    %255 = vmatpush2.xpose.msra.mxu0 0.0
    %256 = vmatprep.subr.mxu0 0.0
    %257 = vmatpush2.xpose.msra.mxu0 0.0
    %258 = vmatprep.mubr.f32.mxu0 0.0
    %259 = vmatmul.mubr.f32.gmra.mxu0 %v113
    %v260 = vpop.f32.mrf.mxu0
    %v261 = vadd.f32 0.0, %v260
    %v262 = vpop.f32.mrf.mxu0
    %263 = vmatprep.mubr.f32.mxu0 0.0
    %264 = vmatmul.mubr.f32.gmra.mxu0 %v116
    %v265 = vpop.f32.mrf.mxu0
    %v266 = vadd.f32 0.0, %v265
    %v267 = vpop.f32.mrf.mxu0
    %268 = vdwg.mxu0
    %vm269 = vcmask 15360
    %270 = vst.msk [vmem:[%s6] sm:$0xff] %vm269, %v261
    %271 = vst.msk [vmem:[%s6 + $0x8] sm:$0xff] %vm269, %v266
    %v272 = vpack.c.bf16 %v104, %v99
    %v274 = vunpack.c.l.b16 %v272
    %v275 = vunpack.c.h.b16 %v272
    %v276 = vpack.c.b16 %v274, %v274
    %v277 = vpack.c.b16 %v275, %v275
    %vm280 = vcmask 125952
    %281 = vst.msk [vmem:[#allocation2] sm:$0xf] %vm280, %v276
    %282 = vst.msk [vmem:[#allocation2 + $0x4] sm:$0xf] %vm280, %v277
    // Predicated region
    $region18: #{tpu_custom_call.1} parent=1 // pred_check
      _
    $region19: #{tpu_custom_call.1} parent=1 // pred_check_branch
      %284 = sbr.rel (0) target = $region21
    $region20: #{tpu_custom_call.1} parent=1 // pred_region
      %s286 = ssub.s32 128, 128
      %287 = vsyncadd [#allocation3], %s286
      %s288 = sshll.u32 [#allocation2], 4
      %s289 = int_to_ptr.vmem [resolvable:$true] %s288
      %294 = dma.vmem_to_hbm [thread:$0]  %s289, 128, %s4, [#allocation3], 64, 64, 4
    $region21: #{tpu_custom_call.1} parent=1 // pred_fallthru
      _
    // Predicated region
    $region22: #{tpu_custom_call.1} parent=1 // pred_check
      _
    $region23: #{tpu_custom_call.1} parent=1 // pred_check_branch
      %296 = sbr.rel (0) target = $region25
    $region24: #{tpu_custom_call.1} parent=1 // pred_region
      %s298 = ssub.s32 32, 32
      %299 = vsyncadd [#allocation5], %s298
      %s301 = sshll.u32 [#allocation4], 4
      %s302 = int_to_ptr.vmem [resolvable:$true] %s301
      %304 = dma.vmem_to_hbm [thread:$0]  %s302, 32, %s5, [#allocation5]
    $region25: #{tpu_custom_call.1} parent=1 // pred_fallthru
      _
    // Predicated region
    $region26: #{tpu_custom_call.1} parent=1 // pred_check
      _
    $region27: #{tpu_custom_call.1} parent=1 // pred_check_branch
      %306 = sbr.rel (0) target = $region29
    $region28: #{tpu_custom_call.1} parent=1 // pred_region
      _
    $region29: #{tpu_custom_call.1} parent=1 // pred_fallthru
      _
    // Predicated region
    $region30: #{tpu_custom_call.1} parent=1 // pred_check
      _
    $region31: #{tpu_custom_call.1} parent=1 // pred_check_branch
      %308 = sbr.rel (0) target = $region33
    $region32: #{tpu_custom_call.1} parent=1 // pred_region
      %309 = dma.done [#allocation3], 128
    $region33: #{tpu_custom_call.1} parent=1 // pred_fallthru
      _
    // Predicated region
    $region34: #{tpu_custom_call.1} parent=1 // pred_check
      _
    $region35: #{tpu_custom_call.1} parent=1 // pred_check_branch
      %311 = sbr.rel (0) target = $region37
    $region36: #{tpu_custom_call.1} parent=1 // pred_region
      %312 = dma.done [#allocation5], 32
    $region37: #{tpu_custom_call.1} parent=1 // pred_fallthru
      _
    // Predicated region
    $region38: #{tpu_custom_call.1} parent=1 // pred_check
      _
    $region39: #{tpu_custom_call.1} parent=1 // pred_check_branch
      %314 = sbr.rel (0) target = $region41
    $region40: #{tpu_custom_call.1} parent=1 // pred_region
      _
    $region41: #{tpu_custom_call.1} parent=1 // pred_fallthru
      _
    %315 = vsyncpa [#allocation3], 1
    %316 = vsyncpa [#allocation5], 1

</llo_original>
